<compile_context>
chip_gen: v5e
topology: v5e:2x2
jax: 0.10.0
libtpu: 0.0.40
codegen_flags: <defaults>
</compile_context>

<pallas_src>
import math

import jax
import jax.numpy as jnp
from jax.experimental import pallas as pl
from jax.experimental.pallas import tpu as pltpu

_LANE = 128     # lane width: feature tile must be a multiple of this (or == feat)
_SUBLANE = 8    # sublane granularity: batch tile must be a multiple (or == N)


def _hw_config():
    """(target_tile_bytes, vmem_limit_bytes) per TPU generation."""
    kind = ""
    try:
        kind = jax.devices()[0].device_kind.lower()
    except Exception:
        pass
    if "v5" in kind or "v6" in kind:
        # 128 MiB VMEM parts: larger tiles, raised scoped-VMEM limit.
        return 8 * 1024 * 1024, 64 * 1024 * 1024
    # v7x (64 MiB VMEM) and unknown generations: stay under the 32 MiB default.
    return 4 * 1024 * 1024, 32 * 1024 * 1024


def _choose_tiles(n, feat, itemsize, target_bytes):
    """Pick (b_tile, f_tile) so each x tile is ~target_bytes and (8,128)-legal."""
    # Feature-axis tile: multiple of 128 and <= feat (ragged last tile is
    # masked by Pallas), or the full dim when feat < 128.
    if feat < _LANE:
        f_tile = feat
    else:
        max_f = max(_LANE,
                    (target_bytes // (_SUBLANE * itemsize)) // _LANE * _LANE)
        f_tile = min(max_f, (feat // _LANE) * _LANE)
    # Batch-axis tile: enough samples to reach the byte target; multiple of 8
    # or the full batch dim. Ragged last batch tile is masked by Pallas.
    want_b = max(1, target_bytes // max(1, f_tile * itemsize))
    if want_b >= n or n <= _SUBLANE:
        b_tile = n
    else:
        b_tile = max(_SUBLANE, (want_b // _SUBLANE) * _SUBLANE)
    return b_tile, f_tile


def _drop_path_kernel(scale_ref, x_ref, o_ref):
    # scale_ref: VMEM (b_tile, 1) float32, per-sample factor 0 or 1/keep_prob.
    # x_ref / o_ref: VMEM (b_tile, f_tile) tile of the flattened input.
    # Multiply happens in float32 (avoids bf16 quantization of 1/keep_prob),
    # then casts back to the output dtype.
    o_ref[...] = (x_ref[...] * scale_ref[...]).astype(o_ref.dtype)


def drop_path(x, drop_prob: float, key, training: bool = True):
    """JAX/Pallas equivalent of drop_path_f (per-sample stochastic depth)."""
    if drop_prob == 0.0 or not training:
        return x

    keep_prob = 1.0 - drop_prob
    orig_shape = x.shape
    n = orig_shape[0]
    feat = max(1, math.prod(orig_shape[1:]))   # all non-batch elems per sample
    itemsize = jnp.dtype(x.dtype).itemsize

    # Per-sample keep decision in float32 (tiny; plain JAX "glue").
    u = jax.random.uniform(key, (n,), dtype=jnp.float32)
    random_tensor = jnp.floor(keep_prob + u)                 # 0.0 or 1.0
    scale = (random_tensor / jnp.float32(keep_prob)).reshape(n, 1)

    # Free, contiguous reshape — no pad, no extra HBM pass.
    x2 = x.reshape(n, feat)

    target_tile_bytes, vmem_limit = _hw_config()
    b_tile, f_tile = _choose_tiles(n, feat, itemsize, target_tile_bytes)
    grid = (pl.cdiv(n, b_tile), pl.cdiv(feat, f_tile))

    out2 = pl.pallas_call(
        _drop_path_kernel,
        out_shape=jax.ShapeDtypeStruct((n, feat), x.dtype),
        grid=grid,
        in_specs=[
            pl.BlockSpec((b_tile, 1), lambda i, j: (i, 0)),        # scale
            pl.BlockSpec((b_tile, f_tile), lambda i, j: (i, j)),   # x
        ],
        out_specs=pl.BlockSpec((b_tile, f_tile), lambda i, j: (i, j)),
        compiler_params=pltpu.CompilerParams(
            dimension_semantics=("parallel", "parallel"),
            vmem_limit_bytes=vmem_limit),
        cost_estimate=pl.CostEstimate(
            flops=int(n * feat),
            transcendentals=0,
            bytes_accessed=int(2 * n * feat * itemsize + n * 4)),
    )(scale, x2)

    return out2.reshape(orig_shape)


class DropPath:
    """Mirror of the PyTorch DropPath module (forward pass)."""

    def __init__(self, drop_prob=None):
        self.drop_prob = 0.0 if drop_prob is None else float(drop_prob)
        self.training = True

    def __call__(self, x, key):
        return drop_path(x, self.drop_prob, key, training=self.training)


if __name__ == "__main__":
    key = jax.random.PRNGKey(0)
    kx, kd, kx2, kd2 = jax.random.split(key, 4)

    drop_prob = 0.25
    keep_prob = 1.0 - drop_prob
    module = DropPath(drop_prob)

    # --- test 1: NCHW f32, feat = 4*16*16 = 1024 (128-aligned) -------------
    x = jax.random.normal(kx, (2, 4, 16, 16), dtype=jnp.float32)
    out = jax.block_until_ready(module(x, kd))
    u = jax.random.uniform(kd, (x.shape[0],), dtype=jnp.float32)
    rt = jnp.floor(keep_prob + u)
    ref = (x / keep_prob) * rt[:, None, None, None]
    assert jnp.allclose(out, ref, atol=1e-6, rtol=1e-6)

    # --- test 2: ragged feature dim (feat = 5*6*7 = 210, not 128-aligned) --
    x2 = jax.random.normal(kx2, (10, 5, 6, 7), dtype=jnp.float32)
    out2 = jax.block_until_ready(module(x2, kd2))
    u2 = jax.random.uniform(kd2, (x2.shape[0],), dtype=jnp.float32)
    rt2 = jnp.floor(keep_prob + u2)
    ref2 = (x2 / keep_prob) * rt2[:, None, None, None]
    assert jnp.allclose(out2, ref2, atol=1e-6, rtol=1e-6)

    # --- eval / drop_prob==0 path: identity, no kernel ----------------------
    module.training = False
    out_eval = jax.block_until_ready(module(x, kd))
    assert jnp.allclose(out_eval, x)

    print("KERNEL_OK")
</pallas_src>

<mosaic_0001>
module attributes {stable_mosaic.version = 11 : i64} {
  func.func @_drop_path_kernel(%arg0: i32, %arg1: i32, %arg2: memref<2x1xf32, #tpu.memory_space<vmem>>, %arg3: memref<2x1024xf32, #tpu.memory_space<vmem>>, %arg4: memref<2x1024xf32, #tpu.memory_space<vmem>>) attributes {dimension_semantics = [#tpu.dimension_semantics<parallel>, #tpu.dimension_semantics<parallel>], iteration_bounds = array<i64: 1, 1>, scalar_prefetch = 0 : i64, scratch_operands = 0 : i64, tpu.core_type = #tpu.core_type<tc>, window_params = [{transform_indices = @transform_0, window_bounds = array<i64: 2, 1>}, {transform_indices = @transform_1, window_bounds = array<i64: 2, 1024>}, {transform_indices = @transform_2, window_bounds = array<i64: 2, 1024>}]} {
    %c0 = arith.constant 0 : index
    %c0_0 = arith.constant 0 : index
    %0 = vector.load %arg3[%c0, %c0_0] : memref<2x1024xf32, #tpu.memory_space<vmem>>, vector<2x1024xf32>
    %c0_1 = arith.constant 0 : index
    %c0_2 = arith.constant 0 : index
    %1 = vector.load %arg2[%c0_1, %c0_2] : memref<2x1xf32, #tpu.memory_space<vmem>>, vector<2x1xf32>
    %2 = vector.broadcast %1 : vector<2x1xf32> to vector<2x1024xf32>
    %3 = arith.mulf %0, %2 : vector<2x1024xf32>
    %c0_3 = arith.constant 0 : index
    %c0_4 = arith.constant 0 : index
    %4 = vector.load %arg4[%c0_3, %c0_4] : memref<2x1024xf32, #tpu.memory_space<vmem>>, vector<2x1024xf32>
    tpu.vector_store %arg4[%c0_3, %c0_4], %3 {strides = array<i32>} : memref<2x1024xf32, #tpu.memory_space<vmem>>, vector<2x1024xf32>,
    return
  }
  func.func @transform_0(%arg0: i32, %arg1: i32) -> (i32, i32) {
    %c0_i32 = arith.constant 0 : i32
    %c0_i32_0 = arith.constant 0 : i32
    return %arg0, %c0_i32 : i32, i32
  }
  func.func @transform_1(%arg0: i32, %arg1: i32) -> (i32, i32) {
    %c0_i32 = arith.constant 0 : i32
    return %arg0, %arg1 : i32, i32
  }
  func.func @transform_2(%arg0: i32, %arg1: i32) -> (i32, i32) {
    %c0_i32 = arith.constant 0 : i32
    return %arg0, %arg1 : i32, i32
  }
}

</mosaic_0001>

<llo_original>
// kernel: tpu_custom_call.1
$region0: #{tpu_custom_call.1}
  #allocation0 [shape = 'u32[]', space=smem, size = 0x4, offset = 0x4, fixed_abs, tag = 'smem constant byte address 0x4 - core index']
  #allocation1 [shape = 'u32[72,128]{1,0:T(1,128)}', space=vmem, size = 0x9000, scoped, tag = 'internal scratch']
  %s0 = inlined_call_operand.vmem [shape: f32[2,1], index: 0, kind: input, shape index: {}]
  %s1 = inlined_call_operand.hbm [shape: f32[2,1024], index: 1, kind: input, shape index: {}]
  %s2 = inlined_call_operand.hbm [shape: f32[2,1024], index: 2, kind: output, shape index: {}]
  %s3 = sld [smem:[#allocation0]]
  $region22: #{tpu_custom_call.1} parent=0
    _
  %s5 = ssub.s32 1, %s3
  %s6 = scalar_select 0, %s5, %s3
  $region1: #{tpu_custom_call.1} parent=0
    #allocation2 [shape = 'u8[8192]{0}', space=vmem, size = 0x2000, scoped, tag = 'input window, operand 1, single buffered']
    #allocation3 [shape = 's32[1]{0}', space=sflag, size = 0x4, scoped, tag = 'scoped memory for tpu_custom_call.1']
    #allocation4 [shape = 's32[1]{0}', space=sflag, size = 0x4, scoped, tag = 'scoped memory for tpu_custom_call.1']
    #allocation5 [shape = 'u8[8192]{0}', space=vmem, size = 0x2000, scoped, tag = 'output window, operand 0, single buffered']
    %7 = vsyncpa [#allocation3], 0
    %8 = vsyncpa [#allocation4], 0
    // Predicated region
    $region2: #{tpu_custom_call.1} parent=1 // pred_check
      _
    $region3: #{tpu_custom_call.1} parent=1 // pred_check_branch
      %10 = sbr.rel (0) target = $region5
    $region4: #{tpu_custom_call.1} parent=1 // pred_region
      _
    $region5: #{tpu_custom_call.1} parent=1 // pred_fallthru
      _
    // Predicated region
    $region6: #{tpu_custom_call.1} parent=1 // pred_check
      _
    $region7: #{tpu_custom_call.1} parent=1 // pred_check_branch
      %12 = sbr.rel (0) target = $region9
    $region8: #{tpu_custom_call.1} parent=1 // pred_region
      %14 = vsyncadd [#allocation3], 0
      %s16 = sshll.u32 %s1, 4
      %s17 = int_to_ptr.hbm [resolvable:$true] %s16
      %s18 = sshll.u32 [#allocation2], 4
      %s19 = int_to_ptr.vmem [resolvable:$true] %s18
      %21 = dma.hbm_to_vmem [thread:$0]  %s17, 256, %s19, [#allocation3]
    $region9: #{tpu_custom_call.1} parent=1 // pred_fallthru
      _
    // Predicated region
    $region10: #{tpu_custom_call.1} parent=1 // pred_check
      _
    $region11: #{tpu_custom_call.1} parent=1 // pred_check_branch
      %23 = sbr.rel (0) target = $region13
    $region12: #{tpu_custom_call.1} parent=1 // pred_region
      %25 = dma.done [#allocation3], 256
    $region13: #{tpu_custom_call.1} parent=1 // pred_fallthru
      _
    %v26 = vld [vmem:[#allocation2] sm:$0xff]
    %v27 = vld [vmem:[#allocation2 + $0x8] sm:$0xff]
    %v28 = vld [vmem:[%s0] sm:$0x3]
    %30 = vset.pattern.permute.xlu0 0
    %31 = vperm.xlu0 %30, %v28
    %v32 = vpop.permute.xlu0 %31
    %v34 = vunpack.c.l.s4 269488144
    %v35 = vunpack.c.0.s8 %v34
    %v36 = vperm.slane %v32, %v35
    %v38 = vmul.f32 %v26, %v36
    %v39 = vmul.f32 %v27, %v36
    %40 = vst [vmem:[#allocation5] sm:$0xff] %v38
    %41 = vst [vmem:[#allocation5 + $0x8] sm:$0xff] %v39
    // Predicated region
    $region14: #{tpu_custom_call.1} parent=1 // pred_check
      _
    $region15: #{tpu_custom_call.1} parent=1 // pred_check_branch
      %43 = sbr.rel (0) target = $region17
    $region16: #{tpu_custom_call.1} parent=1 // pred_region
      %45 = vsyncadd [#allocation4], 0
      %s47 = sshll.u32 [#allocation5], 4
      %s48 = int_to_ptr.vmem [resolvable:$true] %s47
      %s49 = sshll.u32 %s2, 4
      %s50 = int_to_ptr.hbm [resolvable:$true] %s49
      %52 = dma.vmem_to_hbm [thread:$0]  %s48, 256, %s50, [#allocation4]
    $region17: #{tpu_custom_call.1} parent=1 // pred_fallthru
      _
    // Predicated region
    $region18: #{tpu_custom_call.1} parent=1 // pred_check
      _
    $region19: #{tpu_custom_call.1} parent=1 // pred_check_branch
      %54 = sbr.rel (0) target = $region21
    $region20: #{tpu_custom_call.1} parent=1 // pred_region
      %56 = dma.done [#allocation4], 256
    $region21: #{tpu_custom_call.1} parent=1 // pred_fallthru
      _
    %57 = vsyncpa [#allocation3], 1
    %58 = vsyncpa [#allocation4], 1

</llo_original>
